<compile_context>
chip_gen: v6e
topology: v6e:2x2x1
jax: 0.10.0
libtpu: 0.0.40
codegen_flags: <defaults>
</compile_context>

<pallas_src>
import jax
import jax.numpy as jnp
import numpy as np
from jax import lax
from jax.experimental import pallas as pl
from jax.experimental.pallas import tpu as pltpu


def _round_up(n, m):
    return ((n + m - 1) // m) * m


def _default_b_tile(B):
    """Pick the batch tile: biggest tile (<=2048) with <~15% padding waste and
    at least 2 grid steps once B is big enough (v7x has 2 TensorCores)."""
    B128 = _round_up(B, 128)
    if B128 <= 256:
        return B128                      # tiny batch: nothing to shard
    for t in (2048, 1024, 512, 256):
        b_pad = _round_up(B, t)
        if (b_pad - B) <= 0.15 * B and b_pad // t >= 2:
            return t
    return 128


# ----------------------------- the fused kernel --------------------------------

def _social_ripplenet_kernel(eu_ref, ev_ref, w1_ref, w_ref, vec_ref, w3_ref, out_ref):
    f32, bf16 = jnp.float32, jnp.bfloat16

    v = vec_ref[...]                    # [8, P] f32 shifts; rows 0..2 used
    t1, t3, t4 = v[0:1, :], v[1:2, :], v[2:3, :]

    eu = eu_ref[...].astype(bf16)       # [Bt, D]
    ev = ev_ref[...].astype(bf16)       # [Bt, D]

    # Layer 1 (both towers, BN scale folded into weight columns):
    #   relu([eu|ev] @ blockdiag(w_ur1*sc1, w_vr1*sc2) + t1)   (dropout = id, eval)
    # Block-diagonal matmul split into two K=D passes -> no lane concat needed.
    h = jnp.dot(eu, w1_ref[0], preferred_element_type=f32)
    h = h + jnp.dot(ev, w1_ref[1], preferred_element_type=f32)
    h = jnp.maximum(h + t1, 0.0)

    # Layers 2+3 fused (no nonlinearity in between in eval mode):
    #   relu(h @ W23 + t3),  W23 = blockdiag(w_ur2,w_vr2) @ (w_uv1*sc3),
    #   t3 also carries (b2 @ w_uv1)*sc3 and the bn3 shift.
    h = jnp.dot(h.astype(bf16), w_ref[0], preferred_element_type=f32)
    h = jnp.maximum(h + t3, 0.0)

    # Layer 4: relu(h @ (w_uv2*sc4) + t4); lane H is the bias-carry lane
    # (W4 column H is all-zero, t4[H] = 1 -> activation exactly 1).
    h = jnp.dot(h.astype(bf16), w_ref[1], preferred_element_type=f32)
    h = jnp.maximum(h + t4, 0.0)

    # Final 16->1 layer (+ b_uv3 via the carry lane) as A @ B^T with a pre-cast
    # bf16 [8,P] LHS (row 0 = [w_uv3 | b_uv3 | 0...]).  The result lands with
    # batch on the lane axis, so the (1, Bt) store below is lane-dense.  Any
    # implicit transpose of h goes to the otherwise-idle XLU (overlaps with MXU).
    prods = lax.dot_general(w3_ref[...], h.astype(bf16),
                            dimension_numbers=(((1,), (1,)), ((), ())),
                            preferred_element_type=f32)        # [8, Bt]
    out_ref[...] = prods[0:1, :]


def social_ripplenet_forward(embeds_u, embeds_v, p, b_tile=None):
    """Fused forward. embeds_u/embeds_v: [B, D] float32. Returns [B] scores."""
    B, D = embeds_u.shape
    W1uv, W_all, vec, w3b = p["W1uv"], p["W_all"], p["vec"], p["w3b"]
    P = W_all.shape[-1]

    if b_tile is None:
        b_tile = _default_b_tile(B)
    B_pad = _round_up(B, b_tile)
    G = B_pad // b_tile

    # Only the (small) [B, D] embeddings are padded along the batch axis; no
    # 128-lane x is materialized in HBM.
    # TODO(synk): fuse the encoder embedding gathers into the kernel via
    # PrefetchScalarGridSpec(nodes_u, nodes_v) + manual DMA gather from HBM tables.
    if B_pad != B:
        embeds_u = jnp.pad(embeds_u, ((0, B_pad - B), (0, 0)))
        embeds_v = jnp.pad(embeds_v, ((0, B_pad - B), (0, 0)))

    out = pl.pallas_call(
        _social_ripplenet_kernel,
        out_shape=jax.ShapeDtypeStruct((1, B_pad), jnp.float32),
        grid_spec=pltpu.PrefetchScalarGridSpec(
            num_scalar_prefetch=0,
            grid=(G,),
            in_specs=[
                pl.BlockSpec((b_tile, D), lambda i: (i, 0)),    # embeds_u (batch-tiled)
                pl.BlockSpec((b_tile, D), lambda i: (i, 0)),    # embeds_v (batch-tiled)
                pl.BlockSpec((2, D, P), lambda i: (0, 0, 0)),   # layer-1 weights (resident)
                pl.BlockSpec((2, P, P), lambda i: (0, 0, 0)),   # W23, W4 (resident)
                pl.BlockSpec((8, P), lambda i: (0, 0)),         # shifts t1,t3,t4 (resident)
                pl.BlockSpec((8, P), lambda i: (0, 0)),         # bf16 w_uv3/b_uv3 row
            ],
            out_specs=pl.BlockSpec((1, b_tile), lambda i: (0, i)),  # lane-dense scores
        ),
        compiler_params=pltpu.CompilerParams(
            dimension_semantics=("parallel",),
            vmem_limit_bytes=48 * 1024 * 1024,   # fine on v5e/v6e; headroom under v7x 64 MiB
        ),
    )(embeds_u, embeds_v, W1uv, W_all, vec, w3b)
    return out[0, :B]  # scores.squeeze()


# ----------------------------- parameter setup --------------------------------

def make_params(key, embed_dim):
    """Build PyTorch-style params, fold eval-mode BN + fuse layers 2/3, pack/pad."""
    D = embed_dim
    H = 16                                   # w_uv2 output features
    P = max(128, _round_up(2 * D, 128))      # lane-dense padded width (128-multiple)
    assert 2 * D <= P and H + 1 <= P

    keys = iter(list(jax.random.split(key, 30)))

    def lin(fan_in, fan_out):
        bound = 1.0 / np.sqrt(fan_in)
        W = jax.random.uniform(next(keys), (fan_in, fan_out), jnp.float32, -bound, bound)
        b = jax.random.uniform(next(keys), (fan_out,), jnp.float32, -bound, bound)
        return np.asarray(W), np.asarray(b)

    def bn(n):
        gamma = 1.0 + 0.1 * jax.random.normal(next(keys), (n,), jnp.float32)
        beta = 0.1 * jax.random.normal(next(keys), (n,), jnp.float32)
        mean = 0.1 * jax.random.normal(next(keys), (n,), jnp.float32)
        var = 0.5 + jax.random.uniform(next(keys), (n,), jnp.float32)   # positive
        return tuple(np.asarray(a) for a in (gamma, beta, mean, var))

    w_ur1, b_ur1 = lin(D, D)
    w_ur2, b_ur2 = lin(D, D)
    w_vr1, b_vr1 = lin(D, D)
    w_vr2, b_vr2 = lin(D, D)
    w_uv1, b_uv1 = lin(2 * D, D)
    w_uv2, b_uv2 = lin(D, H)
    w_uv3, b_uv3 = lin(H, 1)
    bn1, bn2, bn3, bn4 = bn(D), bn(D), bn(D), bn(H)

    def fold(bias, gamma, beta, mean, var, eps=1e-5):
        scale = gamma / np.sqrt(var + eps)
        shift = beta + scale * (bias - mean)
        return scale.astype(np.float32), shift.astype(np.float32)

    sc1u, t1u = fold(b_ur1, *bn1)
    sc1v, t1v = fold(b_vr1, *bn2)
    sc3, t3b = fold(b_uv1, *bn3)
    sc4, t4b = fold(b_uv2, *bn4)

    # Layer 1: BN scale folded into weight columns; two [D, P] slabs
    # (u-tower writes lanes 0:D, v-tower writes lanes D:2D).
    W1u = np.zeros((D, P), np.float32); W1u[:, :D] = w_ur1 * sc1u[None, :]
    W1v = np.zeros((D, P), np.float32); W1v[:, D:2 * D] = w_vr1 * sc1v[None, :]
    W1uv = np.stack([W1u, W1v])                                    # [2, D, P]

    # Layers 2+3 fused in f32 (eval mode only; exact before the single bf16 cast).
    W2 = np.zeros((P, P), np.float32); W2[:D, :D] = w_ur2; W2[D:2 * D, D:2 * D] = w_vr2
    W3 = np.zeros((P, P), np.float32); W3[:2 * D, :D] = w_uv1 * sc3[None, :]
    W23 = W2 @ W3
    b2 = np.zeros((P,), np.float32); b2[:D] = b_ur2; b2[D:2 * D] = b_vr2

    # Layer 4 with bn4 scale folded; bias-carry column at lane H stays zero.
    W4 = np.zeros((P, P), np.float32); W4[:D, :H] = w_uv2 * sc4[None, :]
    W_all = np.stack([W23, W4])                                    # [2, P, P]

    # Per-feature shifts (rows: t1, t3, t4; rest zero padding).
    vec = np.zeros((8, P), np.float32)
    vec[0, :D] = t1u; vec[0, D:2 * D] = t1v
    vec[1, :D] = t3b
    vec[1, :] += b2 @ W3              # (b2 @ w_uv1) * sc3 folded into the bn3 shift
    vec[2, :H] = t4b
    vec[2, H] = 1.0                   # bias-carry lane: relu(0 + 1) == 1

    # Final-layer row (bf16): lanes 0:H = w_uv3, lane H carries b_uv3.
    w3row = np.zeros((8, P), np.float32)
    w3row[0, :H] = w_uv3[:, 0]
    w3row[0, H] = b_uv3[0]

    # Invariants the bias-carry trick relies on (per correctness review).
    assert np.all(W4[:, H] == 0.0), "bias-carry column of W4 must be zero"
    assert vec[2, H] == 1.0, "bias-carry shift must be 1"
    assert np.all(vec[1, 2 * D:] == 0.0)

    packed = {
        "W1uv": jnp.asarray(W1uv, jnp.bfloat16),     # cast once for the MXU
        "W_all": jnp.asarray(W_all, jnp.bfloat16),
        "vec": jnp.asarray(vec),
        "w3b": jnp.asarray(w3row, jnp.bfloat16),
        # numpy f32 copies (packing validation)
        "W1uv_f32": W1uv, "W_all_f32": W_all, "vec_np": vec, "w3_np": w3row,
    }
    raw = {
        "w_ur1": w_ur1, "b_ur1": b_ur1, "w_ur2": w_ur2, "b_ur2": b_ur2,
        "w_vr1": w_vr1, "b_vr1": b_vr1, "w_vr2": w_vr2, "b_vr2": b_vr2,
        "w_uv1": w_uv1, "b_uv1": b_uv1, "w_uv2": w_uv2, "b_uv2": b_uv2,
        "w_uv3": w_uv3, "b_uv3": b_uv3,
        "bn1": bn1, "bn2": bn2, "bn3": bn3, "bn4": bn4,
    }
    return packed, raw


# ----------------------------- references -------------------------------------

def _np_torch_forward(embeds_u, embeds_v, raw):
    """Original (unpacked, f32) eval-mode module math, in numpy."""
    def bn_eval(x, stats, eps=1e-5):
        g, b, m, v = stats
        return (x - m) / np.sqrt(v + eps) * g + b
    relu = lambda a: np.maximum(a, 0.0)
    eu = np.asarray(embeds_u, np.float32)
    ev = np.asarray(embeds_v, np.float32)
    xu = relu(bn_eval(eu @ raw["w_ur1"] + raw["b_ur1"], raw["bn1"]))
    xu = xu @ raw["w_ur2"] + raw["b_ur2"]
    xv = relu(bn_eval(ev @ raw["w_vr1"] + raw["b_vr1"], raw["bn2"]))
    xv = xv @ raw["w_vr2"] + raw["b_vr2"]
    x = np.concatenate([xu, xv], axis=1)
    x = relu(bn_eval(x @ raw["w_uv1"] + raw["b_uv1"], raw["bn3"]))
    x = relu(bn_eval(x @ raw["w_uv2"] + raw["b_uv2"], raw["bn4"]))
    return (x @ raw["w_uv3"] + raw["b_uv3"])[:, 0]


def _np_packed_forward(embeds_u, embeds_v, p):
    """Packed / padded / folded / fused math in f32 numpy (validates make_params)."""
    W1, W, vec, w3 = p["W1uv_f32"], p["W_all_f32"], p["vec_np"], p["w3_np"]
    eu = np.asarray(embeds_u, np.float32)
    ev = np.asarray(embeds_v, np.float32)
    h = eu @ W1[0] + ev @ W1[1]
    h = np.maximum(h + vec[0:1], 0.0)
    h = np.maximum(h @ W[0] + vec[1:2], 0.0)
    h = np.maximum(h @ W[1] + vec[2:3], 0.0)
    return (h * w3[0:1]).sum(axis=-1)


def packed_reference_bf16(embeds_u, embeds_v, p):
    """Pure-JAX reference that mirrors the kernel's bf16/f32 numerics exactly."""
    f32, bf16 = jnp.float32, jnp.bfloat16
    W1, W, v, w3 = p["W1uv"], p["W_all"], p["vec"], p["w3b"]
    eu = embeds_u.astype(bf16)
    ev = embeds_v.astype(bf16)
    h = (jnp.dot(eu, W1[0], preferred_element_type=f32)
         + jnp.dot(ev, W1[1], preferred_element_type=f32))
    h = jnp.maximum(h + v[0:1], 0.0)
    h = jnp.maximum(jnp.dot(h.astype(bf16), W[0], preferred_element_type=f32) + v[1:2], 0.0)
    h = jnp.maximum(jnp.dot(h.astype(bf16), W[1], preferred_element_type=f32) + v[2:3], 0.0)
    h16 = h.astype(bf16).astype(f32)
    w16 = w3[0:1].astype(f32)
    return jnp.sum(h16 * w16, axis=-1)


# ----------------------------- demo / check ------------------------------------

if __name__ == "__main__":
    B, D = 8, 32
    num_users, num_items = 50, 60

    key = jax.random.PRNGKey(0)
    k_emb_u, k_emb_v, k_u, k_v, k_params = jax.random.split(key, 5)

    # encoder_u / encoder_v stand-ins: deterministic embedding tables (glue).
    emb_table_u = 0.5 * jax.random.normal(k_emb_u, (num_users, D), jnp.float32)
    emb_table_v = 0.5 * jax.random.normal(k_emb_v, (num_items, D), jnp.float32)
    nodes_u = jax.random.randint(k_u, (B,), 0, num_users)
    nodes_v = jax.random.randint(k_v, (B,), 0, num_items)
    embeds_u = emb_table_u[nodes_u]   # [B, D]
    embeds_v = emb_table_v[nodes_v]   # [B, D]

    packed, raw = make_params(k_params, D)

    scores = social_ripplenet_forward(embeds_u, embeds_v, packed)
    scores = jax.block_until_ready(scores)

    # 1) validate the block-diagonal / padded / folded-BN / fused-W23 packing
    #    against the original module math (both f32 numpy -> tight tolerance).
    ref_pack_f32 = _np_packed_forward(embeds_u, embeds_v, packed)
    ref_torch = _np_torch_forward(embeds_u, embeds_v, raw)
    if not np.allclose(ref_pack_f32, ref_torch, rtol=1e-4, atol=1e-4):
        raise AssertionError("packed params do not reproduce the module math")

    # 2) validate the Pallas kernel against the bf16-matched packed reference.
    ref_bf16 = packed_reference_bf16(embeds_u, embeds_v, packed)
    if not np.allclose(np.asarray(scores), np.asarray(ref_bf16), rtol=5e-3, atol=5e-3):
        raise AssertionError("Pallas kernel does not match reference")

    print("KERNEL_OK")
</pallas_src>

<mosaic_0001>
module attributes {stable_mosaic.version = 11 : i64} {
  func.func @_social_ripplenet_kernel(%arg0: i32, %arg1: memref<128x32xf32, #tpu.memory_space<vmem>>, %arg2: memref<128x32xf32, #tpu.memory_space<vmem>>, %arg3: memref<2x32x128xbf16, #tpu.memory_space<vmem>>, %arg4: memref<2x128x128xbf16, #tpu.memory_space<vmem>>, %arg5: memref<8x128xf32, #tpu.memory_space<vmem>>, %arg6: memref<8x128xbf16, #tpu.memory_space<vmem>>, %arg7: memref<1x128xf32, #tpu.memory_space<vmem>>) attributes {dimension_semantics = [#tpu.dimension_semantics<parallel>], iteration_bounds = array<i64: 1>, scalar_prefetch = 0 : i64, scratch_operands = 0 : i64, tpu.core_type = #tpu.core_type<tc>, window_params = [{transform_indices = @transform_0, window_bounds = array<i64: 128, 32>}, {transform_indices = @transform_1, window_bounds = array<i64: 128, 32>}, {pipeline_mode = #tpu.pipeline_mode<synchronous>, transform_indices = @transform_2, window_bounds = array<i64: 2, 32, 128>}, {pipeline_mode = #tpu.pipeline_mode<synchronous>, transform_indices = @transform_3, window_bounds = array<i64: 2, 128, 128>}, {pipeline_mode = #tpu.pipeline_mode<synchronous>, transform_indices = @transform_4, window_bounds = array<i64: 8, 128>}, {pipeline_mode = #tpu.pipeline_mode<synchronous>, transform_indices = @transform_5, window_bounds = array<i64: 8, 128>}, {transform_indices = @transform_6, window_bounds = array<i64: 1, 128>}]} {
    %c0 = arith.constant 0 : index
    %c0_0 = arith.constant 0 : index
    %0 = vector.load %arg5[%c0, %c0_0] : memref<8x128xf32, #tpu.memory_space<vmem>>, vector<8x128xf32>
    %1 = vector.extract_strided_slice %0 {offsets = [0, 0], sizes = [1, 128], strides = [1, 1]} : vector<8x128xf32> to vector<1x128xf32>
    %2 = vector.extract_strided_slice %0 {offsets = [1, 0], sizes = [1, 128], strides = [1, 1]} : vector<8x128xf32> to vector<1x128xf32>
    %3 = vector.extract_strided_slice %0 {offsets = [2, 0], sizes = [1, 128], strides = [1, 1]} : vector<8x128xf32> to vector<1x128xf32>
    %c0_1 = arith.constant 0 : index
    %c0_2 = arith.constant 0 : index
    %4 = vector.load %arg1[%c0_1, %c0_2] : memref<128x32xf32, #tpu.memory_space<vmem>>, vector<128x32xf32>
    %5 = arith.truncf %4 : vector<128x32xf32> to vector<128x32xbf16>
    %c0_3 = arith.constant 0 : index
    %c0_4 = arith.constant 0 : index
    %6 = vector.load %arg2[%c0_3, %c0_4] : memref<128x32xf32, #tpu.memory_space<vmem>>, vector<128x32xf32>
    %7 = arith.truncf %6 : vector<128x32xf32> to vector<128x32xbf16>
    %c0_5 = arith.constant 0 : index
    %c0_6 = arith.constant 0 : index
    %c0_7 = arith.constant 0 : index
    %8 = vector.load %arg3[%c0_5, %c0_6, %c0_7] : memref<2x32x128xbf16, #tpu.memory_space<vmem>>, vector<1x32x128xbf16>
    %9 = vector.shape_cast %8 : vector<1x32x128xbf16> to vector<32x128xbf16>
    %cst = arith.constant dense<0.000000e+00> : vector<128x128xf32>
    %10 = tpu.matmul %5, %9, %cst {dimension_numbers = #tpu.dot_dimension_numbers<[1], [0], [0], [1], [0, 0, 1, 1], [], []>} : vector<128x32xbf16>, vector<32x128xbf16>, vector<128x128xf32> -> vector<128x128xf32>
    %c1 = arith.constant 1 : index
    %c0_8 = arith.constant 0 : index
    %c0_9 = arith.constant 0 : index
    %11 = vector.load %arg3[%c1, %c0_8, %c0_9] : memref<2x32x128xbf16, #tpu.memory_space<vmem>>, vector<1x32x128xbf16>
    %12 = vector.shape_cast %11 : vector<1x32x128xbf16> to vector<32x128xbf16>
    %cst_10 = arith.constant dense<0.000000e+00> : vector<128x128xf32>
    %13 = tpu.matmul %7, %12, %cst_10 {dimension_numbers = #tpu.dot_dimension_numbers<[1], [0], [0], [1], [0, 0, 1, 1], [], []>} : vector<128x32xbf16>, vector<32x128xbf16>, vector<128x128xf32> -> vector<128x128xf32>
    %14 = arith.addf %10, %13 : vector<128x128xf32>
    %15 = vector.broadcast %1 : vector<1x128xf32> to vector<128x128xf32>
    %16 = arith.addf %14, %15 : vector<128x128xf32>
    %cst_11 = arith.constant 0.000000e+00 : f32
    %17 = vector.broadcast %cst_11 : f32 to vector<128x128xf32>
    %18 = arith.maximumf %16, %17 : vector<128x128xf32>
    %19 = arith.truncf %18 : vector<128x128xf32> to vector<128x128xbf16>
    %c0_12 = arith.constant 0 : index
    %c0_13 = arith.constant 0 : index
    %c0_14 = arith.constant 0 : index
    %20 = vector.load %arg4[%c0_12, %c0_13, %c0_14] : memref<2x128x128xbf16, #tpu.memory_space<vmem>>, vector<1x128x128xbf16>
    %21 = vector.shape_cast %20 : vector<1x128x128xbf16> to vector<128x128xbf16>
    %cst_15 = arith.constant dense<0.000000e+00> : vector<128x128xf32>
    %22 = tpu.matmul %19, %21, %cst_15 {dimension_numbers = #tpu.dot_dimension_numbers<[1], [0], [0], [1], [0, 0, 1, 1], [], []>} : vector<128x128xbf16>, vector<128x128xbf16>, vector<128x128xf32> -> vector<128x128xf32>
    %23 = vector.broadcast %2 : vector<1x128xf32> to vector<128x128xf32>
    %24 = arith.addf %22, %23 : vector<128x128xf32>
    %cst_16 = arith.constant 0.000000e+00 : f32
    %25 = vector.broadcast %cst_16 : f32 to vector<128x128xf32>
    %26 = arith.maximumf %24, %25 : vector<128x128xf32>
    %27 = arith.truncf %26 : vector<128x128xf32> to vector<128x128xbf16>
    %c1_17 = arith.constant 1 : index
    %c0_18 = arith.constant 0 : index
    %c0_19 = arith.constant 0 : index
    %28 = vector.load %arg4[%c1_17, %c0_18, %c0_19] : memref<2x128x128xbf16, #tpu.memory_space<vmem>>, vector<1x128x128xbf16>
    %29 = vector.shape_cast %28 : vector<1x128x128xbf16> to vector<128x128xbf16>
    %cst_20 = arith.constant dense<0.000000e+00> : vector<128x128xf32>
    %30 = tpu.matmul %27, %29, %cst_20 {dimension_numbers = #tpu.dot_dimension_numbers<[1], [0], [0], [1], [0, 0, 1, 1], [], []>} : vector<128x128xbf16>, vector<128x128xbf16>, vector<128x128xf32> -> vector<128x128xf32>
    %31 = vector.broadcast %3 : vector<1x128xf32> to vector<128x128xf32>
    %32 = arith.addf %30, %31 : vector<128x128xf32>
    %cst_21 = arith.constant 0.000000e+00 : f32
    %33 = vector.broadcast %cst_21 : f32 to vector<128x128xf32>
    %34 = arith.maximumf %32, %33 : vector<128x128xf32>
    %c0_22 = arith.constant 0 : index
    %c0_23 = arith.constant 0 : index
    %35 = vector.load %arg6[%c0_22, %c0_23] : memref<8x128xbf16, #tpu.memory_space<vmem>>, vector<8x128xbf16>
    %36 = arith.truncf %34 : vector<128x128xf32> to vector<128x128xbf16>
    %cst_24 = arith.constant dense<0.000000e+00> : vector<8x128xf32>
    %37 = tpu.matmul %35, %36, %cst_24 {dimension_numbers = #tpu.dot_dimension_numbers<[1], [1], [0], [0], [0, 0, 1, 0], [], []>} : vector<8x128xbf16>, vector<128x128xbf16>, vector<8x128xf32> -> vector<8x128xf32>
    %38 = vector.extract_strided_slice %37 {offsets = [0, 0], sizes = [1, 128], strides = [1, 1]} : vector<8x128xf32> to vector<1x128xf32>
    %c0_25 = arith.constant 0 : index
    %c0_26 = arith.constant 0 : index
    %39 = vector.load %arg7[%c0_25, %c0_26] : memref<1x128xf32, #tpu.memory_space<vmem>>, vector<1x128xf32>
    tpu.vector_store %arg7[%c0_25, %c0_26], %38 {strides = array<i32>} : memref<1x128xf32, #tpu.memory_space<vmem>>, vector<1x128xf32>,
    return
  }
  func.func @transform_0(%arg0: i32) -> (i32, i32) {
    %c0_i32 = arith.constant 0 : i32
    %c0_i32_0 = arith.constant 0 : i32
    return %arg0, %c0_i32 : i32, i32
  }
  func.func @transform_1(%arg0: i32) -> (i32, i32) {
    %c0_i32 = arith.constant 0 : i32
    %c0_i32_0 = arith.constant 0 : i32
    return %arg0, %c0_i32 : i32, i32
  }
  func.func @transform_2(%arg0: i32) -> (i32, i32, i32) {
    %c0_i32 = arith.constant 0 : i32
    %c0_i32_0 = arith.constant 0 : i32
    %c0_i32_1 = arith.constant 0 : i32
    %c0_i32_2 = arith.constant 0 : i32
    return %c0_i32, %c0_i32_0, %c0_i32_1 : i32, i32, i32
  }
  func.func @transform_3(%arg0: i32) -> (i32, i32, i32) {
    %c0_i32 = arith.constant 0 : i32
    %c0_i32_0 = arith.constant 0 : i32
    %c0_i32_1 = arith.constant 0 : i32
    %c0_i32_2 = arith.constant 0 : i32
    return %c0_i32, %c0_i32_0, %c0_i32_1 : i32, i32, i32
  }
  func.func @transform_4(%arg0: i32) -> (i32, i32) {
    %c0_i32 = arith.constant 0 : i32
    %c0_i32_0 = arith.constant 0 : i32
    %c0_i32_1 = arith.constant 0 : i32
    return %c0_i32, %c0_i32_0 : i32, i32
  }
  func.func @transform_5(%arg0: i32) -> (i32, i32) {
    %c0_i32 = arith.constant 0 : i32
    %c0_i32_0 = arith.constant 0 : i32
    %c0_i32_1 = arith.constant 0 : i32
    return %c0_i32, %c0_i32_0 : i32, i32
  }
  func.func @transform_6(%arg0: i32) -> (i32, i32) {
    %c0_i32 = arith.constant 0 : i32
    %c0_i32_0 = arith.constant 0 : i32
    return %c0_i32, %arg0 : i32, i32
  }
}

</mosaic_0001>

<llo_original>
// kernel: tpu_custom_call.1
$region0: #{tpu_custom_call.1}
  #allocation0 [shape = 'u32[]', space=smem, size = 0x4, offset = 0x4, fixed_abs, tag = 'smem constant byte address 0x4 - core index']
  #allocation1 [shape = 'u32[144,128]{1,0:T(1,128)}', space=vmem, size = 0x12000, scoped, tag = 'internal scratch']
  %s0 = inlined_call_operand.vmem [shape: f32[128,32], index: 0, kind: input, shape index: {}]
  %s1 = inlined_call_operand.vmem [shape: f32[128,32], index: 1, kind: input, shape index: {}]
  %s2 = inlined_call_operand.vmem [shape: bf16[2,32,128], index: 2, kind: input, shape index: {}]
  %s3 = inlined_call_operand.vmem [shape: bf16[2,128,128], index: 3, kind: input, shape index: {}]
  %s4 = inlined_call_operand.vmem [shape: f32[8,128], index: 4, kind: input, shape index: {}]
  %s5 = inlined_call_operand.vmem [shape: bf16[8,128], index: 5, kind: input, shape index: {}]
  %s6 = inlined_call_operand.hbm [shape: f32[1,128], index: 6, kind: output, shape index: {}]
  %s7 = sld [smem:[#allocation0]]
  $region34: #{tpu_custom_call.1} parent=0
    _
  %s9 = ssub.s32 1, %s7
  %s10 = scalar_select 0, %s9, %s7
  $region1: #{tpu_custom_call.1} parent=0
    #allocation2 [shape = 'u8[512]{0}', space=vmem, size = 0x400, scoped, tag = 'output window, operand 0, single buffered']
    #allocation3 [shape = 's32[1]{0}', space=sflag, size = 0x4, scoped, tag = 'scoped memory for tpu_custom_call.1']
    %11 = vsyncpa [#allocation3], 0
    // Predicated region
    $region2: #{tpu_custom_call.1} parent=1 // pred_check
      _
    $region3: #{tpu_custom_call.1} parent=1 // pred_check_branch
      %13 = sbr.rel (0) target = $region5
    $region4: #{tpu_custom_call.1} parent=1 // pred_region
      _
    $region5: #{tpu_custom_call.1} parent=1 // pred_fallthru
      _
    // Predicated region
    $region6: #{tpu_custom_call.1} parent=1 // pred_check
      _
    $region7: #{tpu_custom_call.1} parent=1 // pred_check_branch
      %15 = sbr.rel (0) target = $region9
    $region8: #{tpu_custom_call.1} parent=1 // pred_region
      _
    $region9: #{tpu_custom_call.1} parent=1 // pred_fallthru
      _
    // Predicated region
    $region10: #{tpu_custom_call.1} parent=1 // pred_check
      _
    $region11: #{tpu_custom_call.1} parent=1 // pred_check_branch
      %17 = sbr.rel (0) target = $region13
    $region12: #{tpu_custom_call.1} parent=1 // pred_region
      _
    $region13: #{tpu_custom_call.1} parent=1 // pred_fallthru
      _
    // Predicated region
    $region14: #{tpu_custom_call.1} parent=1 // pred_check
      _
    $region15: #{tpu_custom_call.1} parent=1 // pred_check_branch
      %19 = sbr.rel (0) target = $region17
    $region16: #{tpu_custom_call.1} parent=1 // pred_region
      _
    $region17: #{tpu_custom_call.1} parent=1 // pred_fallthru
      _
    // Predicated region
    $region18: #{tpu_custom_call.1} parent=1 // pred_check
      _
    $region19: #{tpu_custom_call.1} parent=1 // pred_check_branch
      %21 = sbr.rel (0) target = $region21
    $region20: #{tpu_custom_call.1} parent=1 // pred_region
      _
    $region21: #{tpu_custom_call.1} parent=1 // pred_fallthru
      _
    // Predicated region
    $region22: #{tpu_custom_call.1} parent=1 // pred_check
      _
    $region23: #{tpu_custom_call.1} parent=1 // pred_check_branch
      %23 = sbr.rel (0) target = $region25
    $region24: #{tpu_custom_call.1} parent=1 // pred_region
      _
    $region25: #{tpu_custom_call.1} parent=1 // pred_fallthru
      _
    %v25 = vld [vmem:[%s4] sm:$0xff]
    %v26 = vld [vmem:[%s0] sm:$0xff]
    %v27 = vld [vmem:[%s0 + $0x8] sm:$0xff]
    %v28 = vld [vmem:[%s0 + $0x10] sm:$0xff]
    %v29 = vld [vmem:[%s0 + $0x18] sm:$0xff]
    %v30 = vld [vmem:[%s0 + $0x20] sm:$0xff]
    %v31 = vld [vmem:[%s0 + $0x28] sm:$0xff]
    %v32 = vld [vmem:[%s0 + $0x30] sm:$0xff]
    %v33 = vld [vmem:[%s0 + $0x38] sm:$0xff]
    %v34 = vld [vmem:[%s0 + $0x40] sm:$0xff]
    %v35 = vld [vmem:[%s0 + $0x48] sm:$0xff]
    %v36 = vld [vmem:[%s0 + $0x50] sm:$0xff]
    %v37 = vld [vmem:[%s0 + $0x58] sm:$0xff]
    %v38 = vld [vmem:[%s0 + $0x60] sm:$0xff]
    %v39 = vld [vmem:[%s0 + $0x68] sm:$0xff]
    %v40 = vld [vmem:[%s0 + $0x70] sm:$0xff]
    %v41 = vld [vmem:[%s0 + $0x78] sm:$0xff]
    %v42 = vpack.c.bf16 %v27, %v26
    %v43 = vpack.c.bf16 %v29, %v28
    %v44 = vpack.c.bf16 %v31, %v30
    %v45 = vpack.c.bf16 %v33, %v32
    %v46 = vpack.c.bf16 %v35, %v34
    %v47 = vpack.c.bf16 %v37, %v36
    %v48 = vpack.c.bf16 %v39, %v38
    %v49 = vpack.c.bf16 %v41, %v40
    %v50 = vld [vmem:[%s1] sm:$0xff]
    %v51 = vld [vmem:[%s1 + $0x8] sm:$0xff]
    %v52 = vld [vmem:[%s1 + $0x10] sm:$0xff]
    %v53 = vld [vmem:[%s1 + $0x18] sm:$0xff]
    %v54 = vld [vmem:[%s1 + $0x20] sm:$0xff]
    %v55 = vld [vmem:[%s1 + $0x28] sm:$0xff]
    %v56 = vld [vmem:[%s1 + $0x30] sm:$0xff]
    %v57 = vld [vmem:[%s1 + $0x38] sm:$0xff]
    %v58 = vld [vmem:[%s1 + $0x40] sm:$0xff]
    %v59 = vld [vmem:[%s1 + $0x48] sm:$0xff]
    %v60 = vld [vmem:[%s1 + $0x50] sm:$0xff]
    %v61 = vld [vmem:[%s1 + $0x58] sm:$0xff]
    %v62 = vld [vmem:[%s1 + $0x60] sm:$0xff]
    %v63 = vld [vmem:[%s1 + $0x68] sm:$0xff]
    %v64 = vld [vmem:[%s1 + $0x70] sm:$0xff]
    %v65 = vld [vmem:[%s1 + $0x78] sm:$0xff]
    %v66 = vpack.c.bf16 %v51, %v50
    %v67 = vpack.c.bf16 %v53, %v52
    %v68 = vpack.c.bf16 %v55, %v54
    %v69 = vpack.c.bf16 %v57, %v56
    %v70 = vpack.c.bf16 %v59, %v58
    %v71 = vpack.c.bf16 %v61, %v60
    %v72 = vpack.c.bf16 %v63, %v62
    %v73 = vpack.c.bf16 %v65, %v64
    %v74 = vld [vmem:[%s2] sm:$0xf]
    %v75 = vld [vmem:[%s2 + $0x4] sm:$0xf]
    %v76 = vld [vmem:[%s2 + $0x8] sm:$0xf]
    %v77 = vld [vmem:[%s2 + $0xc] sm:$0xf]
    %s78 = scalar_lea.vmem %s2, 16
    %v79 = vld [vmem:[%s78] sm:$0xf]
    %v80 = vld [vmem:[%s78 + $0x4] sm:$0xf]
    %v81 = vld [vmem:[%s78 + $0x8] sm:$0xf]
    %v82 = vld [vmem:[%s78 + $0xc] sm:$0xf]
    %v87 = vunpack.c.l.b16 %v79
    %v88 = vunpack.c.l.b16 %v80
    %v89 = vunpack.c.l.b16 %v81
    %v90 = vunpack.c.l.b16 %v82
    %v91 = vpack.c.b16 %v88, %v87
    %v92 = vpack.c.b16 %v90, %v89
    %vm95 = vcmask 261120
    %v97 = vsel %vm95, %v66, 0
    %v100 = vsel %vm95, %v67, 0
    %v103 = vsel %vm95, %v68, 0
    %v106 = vsel %vm95, %v69, 0
    %v109 = vsel %vm95, %v70, 0
    %v112 = vsel %vm95, %v71, 0
    %v115 = vsel %vm95, %v72, 0
    %v118 = vsel %vm95, %v73, 0
    %120 = vmatprep.subr.bf16.mxu0 0
    %121 = vmatpush1.bf16.msra.mxu0 0
    %122 = vmatprep.subr.bf16.mxu0 0
    %123 = vmatpush1.bf16.msra.mxu0 0
    %124 = vmatprep.subr.bf16.mxu0 0
    %125 = vmatpush1.bf16.msra.mxu0 0
    %126 = vmatprep.subr.bf16.mxu0 0
    %127 = vmatpush1.bf16.msra.mxu0 0
    %128 = vmatprep.subr.bf16.mxu0 0
    %129 = vmatpush1.bf16.msra.mxu0 0
    %130 = vmatprep.subr.bf16.mxu0 0
    %131 = vmatpush1.bf16.msra.mxu0 0
    %132 = vmatprep.subr.bf16.mxu0 0
    %133 = vmatpush1.bf16.msra.mxu0 %v92
    %134 = vmatprep.subr.bf16.mxu0 0
    %135 = vmatpush1.bf16.msra.mxu0 %v91
    %136 = vmatprep.subr.bf16.mxu0 0
    %137 = vmatpush2.bf16.msra.mxu0 0
    %138 = vmatprep.subr.bf16.mxu0 0
    %139 = vmatpush2.bf16.msra.mxu0 0
    %140 = vmatprep.subr.bf16.mxu0 0
    %141 = vmatpush2.bf16.msra.mxu0 0
    %142 = vmatprep.subr.bf16.mxu0 0
    %143 = vmatpush2.bf16.msra.mxu0 0
    %144 = vmatprep.subr.bf16.mxu0 0
    %145 = vmatpush2.bf16.msra.mxu0 0
    %146 = vmatprep.subr.bf16.mxu0 0
    %147 = vmatpush2.bf16.msra.mxu0 0
    %148 = vmatprep.subr.bf16.mxu0 0
    %149 = vmatpush2.bf16.msra.mxu0 0
    %150 = vmatprep.subr.bf16.mxu0 0
    %151 = vmatpush2.bf16.msra.mxu0 0
    %152 = vmatprep.mubr.bf16.mxu0 0
    %153 = vmatmul.mubr.bf16.gmra.mxu0 %v97
    %v154 = vpop.f32.mrf.mxu0
    %v155 = vadd.f32 0.0, %v154
    %v156 = vpop.f32.mrf.mxu0
    %v157 = vpop.f32.mrf.mxu0
    %v158 = vadd.f32 0.0, %v157
    %v159 = vpop.f32.mrf.mxu0
    %160 = vmatprep.mubr.bf16.mxu0 0
    %161 = vmatmul.mubr.bf16.gmra.mxu0 %v100
    %v162 = vpop.f32.mrf.mxu0
    %v163 = vadd.f32 0.0, %v162
    %v164 = vpop.f32.mrf.mxu0
    %v165 = vpop.f32.mrf.mxu0
    %v166 = vadd.f32 0.0, %v165
    %v167 = vpop.f32.mrf.mxu0
    %168 = vmatprep.mubr.bf16.mxu0 0
    %169 = vmatmul.mubr.bf16.gmra.mxu0 %v103
    %v170 = vpop.f32.mrf.mxu0
    %v171 = vadd.f32 0.0, %v170
    %v172 = vpop.f32.mrf.mxu0
    %v173 = vpop.f32.mrf.mxu0
    %v174 = vadd.f32 0.0, %v173
    %v175 = vpop.f32.mrf.mxu0
    %176 = vmatprep.mubr.bf16.mxu0 0
    %177 = vmatmul.mubr.bf16.gmra.mxu0 %v106
    %v178 = vpop.f32.mrf.mxu0
    %v179 = vadd.f32 0.0, %v178
    %v180 = vpop.f32.mrf.mxu0
    %v181 = vpop.f32.mrf.mxu0
    %v182 = vadd.f32 0.0, %v181
    %v183 = vpop.f32.mrf.mxu0
    %184 = vmatprep.mubr.bf16.mxu0 0
    %185 = vmatmul.mubr.bf16.gmra.mxu0 %v109
    %v186 = vpop.f32.mrf.mxu0
    %v187 = vadd.f32 0.0, %v186
    %v188 = vpop.f32.mrf.mxu0
    %v189 = vpop.f32.mrf.mxu0
    %v190 = vadd.f32 0.0, %v189
    %v191 = vpop.f32.mrf.mxu0
    %192 = vmatprep.mubr.bf16.mxu0 0
    %193 = vmatmul.mubr.bf16.gmra.mxu0 %v112
    %v194 = vpop.f32.mrf.mxu0
    %v195 = vadd.f32 0.0, %v194
    %v196 = vpop.f32.mrf.mxu0
    %v197 = vpop.f32.mrf.mxu0
    %v198 = vadd.f32 0.0, %v197
    %v199 = vpop.f32.mrf.mxu0
    %200 = vmatprep.mubr.bf16.mxu0 0
    %201 = vmatmul.mubr.bf16.gmra.mxu0 %v115
    %v202 = vpop.f32.mrf.mxu0
    %v203 = vadd.f32 0.0, %v202
    %v204 = vpop.f32.mrf.mxu0
    %v205 = vpop.f32.mrf.mxu0
    %v206 = vadd.f32 0.0, %v205
    %v207 = vpop.f32.mrf.mxu0
    %208 = vmatprep.mubr.bf16.mxu0 0
    %209 = vmatmul.mubr.bf16.gmra.mxu0 %v118
    %v210 = vpop.f32.mrf.mxu0
    %v211 = vadd.f32 0.0, %v210
    %v212 = vpop.f32.mrf.mxu0
    %v213 = vpop.f32.mrf.mxu0
    %v214 = vadd.f32 0.0, %v213
    %v215 = vpop.f32.mrf.mxu0
    %216 = vdwg.mxu0
    %v221 = vunpack.c.l.b16 %v74
    %v222 = vunpack.c.l.b16 %v75
    %v223 = vunpack.c.l.b16 %v76
    %v224 = vunpack.c.l.b16 %v77
    %v225 = vpack.c.b16 %v222, %v221
    %v226 = vpack.c.b16 %v224, %v223
    %v230 = vsel %vm95, %v42, 0
    %v233 = vsel %vm95, %v43, 0
    %v236 = vsel %vm95, %v44, 0
    %v239 = vsel %vm95, %v45, 0
    %v242 = vsel %vm95, %v46, 0
    %v245 = vsel %vm95, %v47, 0
    %v248 = vsel %vm95, %v48, 0
    %v251 = vsel %vm95, %v49, 0
    %253 = vmatprep.subr.bf16.mxu0 0
    %254 = vmatpush1.bf16.msra.mxu0 0
    %255 = vmatprep.subr.bf16.mxu0 0
    %256 = vmatpush1.bf16.msra.mxu0 0
    %257 = vmatprep.subr.bf16.mxu0 0
    %258 = vmatpush1.bf16.msra.mxu0 0
    %259 = vmatprep.subr.bf16.mxu0 0
    %260 = vmatpush1.bf16.msra.mxu0 0
    %261 = vmatprep.subr.bf16.mxu0 0
    %262 = vmatpush1.bf16.msra.mxu0 0
    %263 = vmatprep.subr.bf16.mxu0 0
    %264 = vmatpush1.bf16.msra.mxu0 0
    %265 = vmatprep.subr.bf16.mxu0 0
    %266 = vmatpush1.bf16.msra.mxu0 %v226
    %267 = vmatprep.subr.bf16.mxu0 0
    %268 = vmatpush1.bf16.msra.mxu0 %v225
    %269 = vmatprep.subr.bf16.mxu0 0
    %270 = vmatpush2.bf16.msra.mxu0 0
    %271 = vmatprep.subr.bf16.mxu0 0
    %272 = vmatpush2.bf16.msra.mxu0 0
    %273 = vmatprep.subr.bf16.mxu0 0
    %274 = vmatpush2.bf16.msra.mxu0 0
    %275 = vmatprep.subr.bf16.mxu0 0
    %276 = vmatpush2.bf16.msra.mxu0 0
    %277 = vmatprep.subr.bf16.mxu0 0
    %278 = vmatpush2.bf16.msra.mxu0 0
    %279 = vmatprep.subr.bf16.mxu0 0
    %280 = vmatpush2.bf16.msra.mxu0 0
    %281 = vmatprep.subr.bf16.mxu0 0
    %282 = vmatpush2.bf16.msra.mxu0 0
    %283 = vmatprep.subr.bf16.mxu0 0
    %284 = vmatpush2.bf16.msra.mxu0 0
    %285 = vmatprep.mubr.bf16.mxu0 0
    %286 = vmatmul.mubr.bf16.gmra.mxu0 %v230
    %v287 = vpop.f32.mrf.mxu0
    %v288 = vadd.f32 %v155, %v287
    %v289 = vpop.f32.mrf.mxu0
    %v290 = vpop.f32.mrf.mxu0
    %v291 = vadd.f32 %v158, %v290
    %v292 = vpop.f32.mrf.mxu0
    %293 = vmatprep.mubr.bf16.mxu0 0
    %294 = vmatmul.mubr.bf16.gmra.mxu0 %v233
    %v295 = vpop.f32.mrf.mxu0
    %v296 = vadd.f32 %v163, %v295
    %v297 = vpop.f32.mrf.mxu0
    %v298 = vpop.f32.mrf.mxu0
    %v299 = vadd.f32 %v166, %v298
    %v300 = vpop.f32.mrf.mxu0
    %301 = vmatprep.mubr.bf16.mxu0 0
    %302 = vmatmul.mubr.bf16.gmra.mxu0 %v236
    %v303 = vpop.f32.mrf.mxu0
    %v304 = vadd.f32 %v171, %v303
    %v305 = vpop.f32.mrf.mxu0
    %v306 = vpop.f32.mrf.mxu0
    %v307 = vadd.f32 %v174, %v306
    %v308 = vpop.f32.mrf.mxu0
    %309 = vmatprep.mubr.bf16.mxu0 0
    %310 = vmatmul.mubr.bf16.gmra.mxu0 %v239
    %v311 = vpop.f32.mrf.mxu0
    %v312 = vadd.f32 %v179, %v311
    %v313 = vpop.f32.mrf.mxu0
    %v314 = vpop.f32.mrf.mxu0
    %v315 = vadd.f32 %v182, %v314
    %v316 = vpop.f32.mrf.mxu0
    %317 = vmatprep.mubr.bf16.mxu0 0
    %318 = vmatmul.mubr.bf16.gmra.mxu0 %v242
    %v319 = vpop.f32.mrf.mxu0
    %v320 = vadd.f32 %v187, %v319
    %v321 = vpop.f32.mrf.mxu0
    %v322 = vpop.f32.mrf.mxu0
    %v323 = vadd.f32 %v190, %v322
    %v324 = vpop.f32.mrf.mxu0
    %325 = vmatprep.mubr.bf16.mxu0 0
    %326 = vmatmul.mubr.bf16.gmra.mxu0 %v245
    %v327 = vpop.f32.mrf.mxu0
    %v328 = vadd.f32 %v195, %v327
    %v329 = vpop.f32.mrf.mxu0
    %v330 = vpop.f32.mrf.mxu0
    %v331 = vadd.f32 %v198, %v330
    %v332 = vpop.f32.mrf.mxu0
    %333 = vmatprep.mubr.bf16.mxu0 0
    %334 = vmatmul.mubr.bf16.gmra.mxu0 %v248
    %v335 = vpop.f32.mrf.mxu0
    %v336 = vadd.f32 %v203, %v335
    %v337 = vpop.f32.mrf.mxu0
    %v338 = vpop.f32.mrf.mxu0
    %v339 = vadd.f32 %v206, %v338
    %v340 = vpop.f32.mrf.mxu0
    %341 = vmatprep.mubr.bf16.mxu0 0
    %342 = vmatmul.mubr.bf16.gmra.mxu0 %v251
    %v343 = vpop.f32.mrf.mxu0
    %v344 = vadd.f32 %v211, %v343
    %v345 = vpop.f32.mrf.mxu0
    %v346 = vpop.f32.mrf.mxu0
    %v347 = vadd.f32 %v214, %v346
    %v348 = vpop.f32.mrf.mxu0
    %349 = vdwg.mxu0
    %v350 = vlaneseq
    %v351 = vshrl.u32 %v350, 7
    %v352 = vsub.s32 0, %v351
    %v353 = vrot.slane %v25, %v352
    %v354 = vadd.f32 %v288, %v353
    %v355 = vadd.f32 %v291, %v353
    %v356 = vadd.f32 %v296, %v353
    %v357 = vadd.f32 %v299, %v353
    %v358 = vadd.f32 %v304, %v353
    %v359 = vadd.f32 %v307, %v353
    %v360 = vadd.f32 %v312, %v353
    %v361 = vadd.f32 %v315, %v353
    %v362 = vadd.f32 %v320, %v353
    %v363 = vadd.f32 %v323, %v353
    %v364 = vadd.f32 %v328, %v353
    %v365 = vadd.f32 %v331, %v353
    %v366 = vadd.f32 %v336, %v353
    %v367 = vadd.f32 %v339, %v353
    %v368 = vadd.f32 %v344, %v353
    %v369 = vadd.f32 %v347, %v353
    %v370 = vmax.f32 %v354, 0.0
    %v371 = vmax.f32 %v355, 0.0
    %v372 = vmax.f32 %v356, 0.0
    %v373 = vmax.f32 %v357, 0.0
    %v374 = vmax.f32 %v358, 0.0
    %v375 = vmax.f32 %v359, 0.0
    %v376 = vmax.f32 %v360, 0.0
    %v377 = vmax.f32 %v361, 0.0
    %v378 = vmax.f32 %v362, 0.0
    %v379 = vmax.f32 %v363, 0.0
    %v380 = vmax.f32 %v364, 0.0
    %v381 = vmax.f32 %v365, 0.0
    %v382 = vmax.f32 %v366, 0.0
    %v383 = vmax.f32 %v367, 0.0
    %v384 = vmax.f32 %v368, 0.0
    %v385 = vmax.f32 %v369, 0.0
    %v386 = vpack.c.bf16 %v371, %v370
    %v387 = vpack.c.bf16 %v373, %v372
    %v388 = vpack.c.bf16 %v375, %v374
    %v389 = vpack.c.bf16 %v377, %v376
    %v390 = vpack.c.bf16 %v379, %v378
    %v391 = vpack.c.bf16 %v381, %v380
    %v392 = vpack.c.bf16 %v383, %v382
    %v393 = vpack.c.bf16 %v385, %v384
    %v394 = vld [vmem:[%s3] sm:$0xf]
    %v395 = vld [vmem:[%s3 + $0x4] sm:$0xf]
    %v396 = vld [vmem:[%s3 + $0x8] sm:$0xf]
    %v397 = vld [vmem:[%s3 + $0xc] sm:$0xf]
    %v398 = vld [vmem:[%s3 + $0x10] sm:$0xf]
    %v399 = vld [vmem:[%s3 + $0x14] sm:$0xf]
    %v400 = vld [vmem:[%s3 + $0x18] sm:$0xf]
    %v401 = vld [vmem:[%s3 + $0x1c] sm:$0xf]
    %v402 = vld [vmem:[%s3 + $0x20] sm:$0xf]
    %v403 = vld [vmem:[%s3 + $0x24] sm:$0xf]
    %v404 = vld [vmem:[%s3 + $0x28] sm:$0xf]
    %v405 = vld [vmem:[%s3 + $0x2c] sm:$0xf]
    %v406 = vld [vmem:[%s3 + $0x30] sm:$0xf]
    %v407 = vld [vmem:[%s3 + $0x34] sm:$0xf]
    %v408 = vld [vmem:[%s3 + $0x38] sm:$0xf]
    %v409 = vld [vmem:[%s3 + $0x3c] sm:$0xf]
    %v410 = vlaneseq
    %v411 = vshrl.u32 %v410, 7
    %v412 = vsub.s32 1, %v411
    %v413 = vrot.slane %v25, %v412
    %v430 = vunpack.c.l.b16 %v394
    %v431 = vunpack.c.l.b16 %v395
    %v432 = vunpack.c.l.b16 %v396
    %v433 = vunpack.c.l.b16 %v397
    %v434 = vunpack.c.l.b16 %v398
    %v435 = vunpack.c.l.b16 %v399
    %v436 = vunpack.c.l.b16 %v400
    %v437 = vunpack.c.l.b16 %v401
    %v438 = vunpack.c.l.b16 %v402
    %v439 = vunpack.c.l.b16 %v403
    %v440 = vunpack.c.l.b16 %v404
    %v441 = vunpack.c.l.b16 %v405
    %v442 = vunpack.c.l.b16 %v406
    %v443 = vunpack.c.l.b16 %v407
    %v444 = vunpack.c.l.b16 %v408
    %v445 = vunpack.c.l.b16 %v409
    %v446 = vpack.c.b16 %v431, %v430
    %v447 = vpack.c.b16 %v433, %v432
    %v448 = vpack.c.b16 %v435, %v434
    %v449 = vpack.c.b16 %v437, %v436
    %v450 = vpack.c.b16 %v439, %v438
    %v451 = vpack.c.b16 %v441, %v440
    %v452 = vpack.c.b16 %v443, %v442
    %v453 = vpack.c.b16 %v445, %v444
    %462 = vmatprep.subr.bf16.mxu0 0
    %463 = vmatpush1.bf16.msra.mxu0 %v453
    %464 = vmatprep.subr.bf16.mxu0 0
    %465 = vmatpush1.bf16.msra.mxu0 %v452
    %466 = vmatprep.subr.bf16.mxu0 0
    %467 = vmatpush1.bf16.msra.mxu0 %v451
    %468 = vmatprep.subr.bf16.mxu0 0
    %469 = vmatpush1.bf16.msra.mxu0 %v450
    %470 = vmatprep.subr.bf16.mxu0 0
    %471 = vmatpush1.bf16.msra.mxu0 %v449
    %472 = vmatprep.subr.bf16.mxu0 0
    %473 = vmatpush1.bf16.msra.mxu0 %v448
    %474 = vmatprep.subr.bf16.mxu0 0
    %475 = vmatpush1.bf16.msra.mxu0 %v447
    %476 = vmatprep.subr.bf16.mxu0 0
    %477 = vmatpush1.bf16.msra.mxu0 %v446
    %478 = vmatprep.subr.bf16.mxu0 0
    %479 = vmatpush2.bf16.msra.mxu0 0
    %480 = vmatprep.subr.bf16.mxu0 0
    %481 = vmatpush2.bf16.msra.mxu0 0
    %482 = vmatprep.subr.bf16.mxu0 0
    %483 = vmatpush2.bf16.msra.mxu0 0
    %484 = vmatprep.subr.bf16.mxu0 0
    %485 = vmatpush2.bf16.msra.mxu0 0
    %486 = vmatprep.subr.bf16.mxu0 0
    %487 = vmatpush2.bf16.msra.mxu0 0
    %488 = vmatprep.subr.bf16.mxu0 0
    %489 = vmatpush2.bf16.msra.mxu0 0
    %490 = vmatprep.subr.bf16.mxu0 0
    %491 = vmatpush2.bf16.msra.mxu0 0
    %492 = vmatprep.subr.bf16.mxu0 0
    %493 = vmatpush2.bf16.msra.mxu0 0
    %494 = vmatprep.mubr.bf16.mxu0 0
    %495 = vmatmul.mubr.bf16.gmra.mxu0 %v386
    %v496 = vpop.f32.mrf.mxu0
    %v497 = vadd.f32 %v413, %v496
    %v498 = vpop.f32.mrf.mxu0
    %v499 = vpop.f32.mrf.mxu0
    %v500 = vadd.f32 %v413, %v499
    %v501 = vpop.f32.mrf.mxu0
    %502 = vmatprep.mubr.bf16.mxu0 0
    %503 = vmatmul.mubr.bf16.gmra.mxu0 %v387
    %v504 = vpop.f32.mrf.mxu0
    %v505 = vadd.f32 %v413, %v504
    %v506 = vpop.f32.mrf.mxu0
    %v507 = vpop.f32.mrf.mxu0
    %v508 = vadd.f32 %v413, %v507
    %v509 = vpop.f32.mrf.mxu0
    %510 = vmatprep.mubr.bf16.mxu0 0
    %511 = vmatmul.mubr.bf16.gmra.mxu0 %v388
    %v512 = vpop.f32.mrf.mxu0
    %v513 = vadd.f32 %v413, %v512
    %v514 = vpop.f32.mrf.mxu0
    %v515 = vpop.f32.mrf.mxu0
    %v516 = vadd.f32 %v413, %v515
    %v517 = vpop.f32.mrf.mxu0
    %518 = vmatprep.mubr.bf16.mxu0 0
    %519 = vmatmul.mubr.bf16.gmra.mxu0 %v389
    %v520 = vpop.f32.mrf.mxu0
    %v521 = vadd.f32 %v413, %v520
    %v522 = vpop.f32.mrf.mxu0
    %v523 = vpop.f32.mrf.mxu0
    %v524 = vadd.f32 %v413, %v523
    %v525 = vpop.f32.mrf.mxu0
    %526 = vmatprep.mubr.bf16.mxu0 0
    %527 = vmatmul.mubr.bf16.gmra.mxu0 %v390
    %v528 = vpop.f32.mrf.mxu0
    %v529 = vadd.f32 %v413, %v528
    %v530 = vpop.f32.mrf.mxu0
    %v531 = vpop.f32.mrf.mxu0
    %v532 = vadd.f32 %v413, %v531
    %v533 = vpop.f32.mrf.mxu0
    %534 = vmatprep.mubr.bf16.mxu0 0
    %535 = vmatmul.mubr.bf16.gmra.mxu0 %v391
    %v536 = vpop.f32.mrf.mxu0
    %v537 = vadd.f32 %v413, %v536
    %v538 = vpop.f32.mrf.mxu0
    %v539 = vpop.f32.mrf.mxu0
    %v540 = vadd.f32 %v413, %v539
    %v541 = vpop.f32.mrf.mxu0
    %542 = vmatprep.mubr.bf16.mxu0 0
    %543 = vmatmul.mubr.bf16.gmra.mxu0 %v392
    %v544 = vpop.f32.mrf.mxu0
    %v545 = vadd.f32 %v413, %v544
    %v546 = vpop.f32.mrf.mxu0
    %v547 = vpop.f32.mrf.mxu0
    %v548 = vadd.f32 %v413, %v547
    %v549 = vpop.f32.mrf.mxu0
    %550 = vmatprep.mubr.bf16.mxu0 0
    %551 = vmatmul.mubr.bf16.gmra.mxu0 %v393
    %v552 = vpop.f32.mrf.mxu0
    %v553 = vadd.f32 %v413, %v552
    %v554 = vpop.f32.mrf.mxu0
    %v555 = vpop.f32.mrf.mxu0
    %v556 = vadd.f32 %v413, %v555
    %v557 = vpop.f32.mrf.mxu0
    %558 = vdwg.mxu0
    %v559 = vmax.f32 %v497, 0.0
    %v560 = vmax.f32 %v500, 0.0
    %v561 = vmax.f32 %v505, 0.0
    %v562 = vmax.f32 %v508, 0.0
    %v563 = vmax.f32 %v513, 0.0
    %v564 = vmax.f32 %v516, 0.0
    %v565 = vmax.f32 %v521, 0.0
    %v566 = vmax.f32 %v524, 0.0
    %v567 = vmax.f32 %v529, 0.0
    %v568 = vmax.f32 %v532, 0.0
    %v569 = vmax.f32 %v537, 0.0
    %v570 = vmax.f32 %v540, 0.0
    %v571 = vmax.f32 %v545, 0.0
    %v572 = vmax.f32 %v548, 0.0
    %v573 = vmax.f32 %v553, 0.0
    %v574 = vmax.f32 %v556, 0.0
    %v575 = vpack.c.bf16 %v560, %v559
    %v576 = vpack.c.bf16 %v562, %v561
    %v577 = vpack.c.bf16 %v564, %v563
    %v578 = vpack.c.bf16 %v566, %v565
    %v579 = vpack.c.bf16 %v568, %v567
    %v580 = vpack.c.bf16 %v570, %v569
    %v581 = vpack.c.bf16 %v572, %v571
    %v582 = vpack.c.bf16 %v574, %v573
    %s583 = scalar_lea.vmem %s3, 64
    %v584 = vld [vmem:[%s583] sm:$0xf]
    %v585 = vld [vmem:[%s583 + $0x4] sm:$0xf]
    %v586 = vld [vmem:[%s583 + $0x8] sm:$0xf]
    %v587 = vld [vmem:[%s583 + $0xc] sm:$0xf]
    %v588 = vld [vmem:[%s583 + $0x10] sm:$0xf]
    %v589 = vld [vmem:[%s583 + $0x14] sm:$0xf]
    %v590 = vld [vmem:[%s583 + $0x18] sm:$0xf]
    %v591 = vld [vmem:[%s583 + $0x1c] sm:$0xf]
    %v592 = vld [vmem:[%s583 + $0x20] sm:$0xf]
    %v593 = vld [vmem:[%s583 + $0x24] sm:$0xf]
    %v594 = vld [vmem:[%s583 + $0x28] sm:$0xf]
    %v595 = vld [vmem:[%s583 + $0x2c] sm:$0xf]
    %v596 = vld [vmem:[%s583 + $0x30] sm:$0xf]
    %v597 = vld [vmem:[%s583 + $0x34] sm:$0xf]
    %v598 = vld [vmem:[%s583 + $0x38] sm:$0xf]
    %v599 = vld [vmem:[%s583 + $0x3c] sm:$0xf]
    %v600 = vlaneseq
    %v601 = vshrl.u32 %v600, 7
    %v602 = vsub.s32 2, %v601
    %v603 = vrot.slane %v25, %v602
    %v620 = vunpack.c.l.b16 %v584
    %v621 = vunpack.c.l.b16 %v585
    %v622 = vunpack.c.l.b16 %v586
    %v623 = vunpack.c.l.b16 %v587
    %v624 = vunpack.c.l.b16 %v588
    %v625 = vunpack.c.l.b16 %v589
    %v626 = vunpack.c.l.b16 %v590
    %v627 = vunpack.c.l.b16 %v591
    %v628 = vunpack.c.l.b16 %v592
    %v629 = vunpack.c.l.b16 %v593
    %v630 = vunpack.c.l.b16 %v594
    %v631 = vunpack.c.l.b16 %v595
    %v632 = vunpack.c.l.b16 %v596
    %v633 = vunpack.c.l.b16 %v597
    %v634 = vunpack.c.l.b16 %v598
    %v635 = vunpack.c.l.b16 %v599
    %v636 = vpack.c.b16 %v621, %v620
    %v637 = vpack.c.b16 %v623, %v622
    %v638 = vpack.c.b16 %v625, %v624
    %v639 = vpack.c.b16 %v627, %v626
    %v640 = vpack.c.b16 %v629, %v628
    %v641 = vpack.c.b16 %v631, %v630
    %v642 = vpack.c.b16 %v633, %v632
    %v643 = vpack.c.b16 %v635, %v634
    %652 = vmatprep.subr.bf16.mxu0 0
    %653 = vmatpush1.bf16.msra.mxu0 %v643
    %654 = vmatprep.subr.bf16.mxu0 0
    %655 = vmatpush1.bf16.msra.mxu0 %v642
    %656 = vmatprep.subr.bf16.mxu0 0
    %657 = vmatpush1.bf16.msra.mxu0 %v641
    %658 = vmatprep.subr.bf16.mxu0 0
    %659 = vmatpush1.bf16.msra.mxu0 %v640
    %660 = vmatprep.subr.bf16.mxu0 0
    %661 = vmatpush1.bf16.msra.mxu0 %v639
    %662 = vmatprep.subr.bf16.mxu0 0
    %663 = vmatpush1.bf16.msra.mxu0 %v638
    %664 = vmatprep.subr.bf16.mxu0 0
    %665 = vmatpush1.bf16.msra.mxu0 %v637
    %666 = vmatprep.subr.bf16.mxu0 0
    %667 = vmatpush1.bf16.msra.mxu0 %v636
    %668 = vmatprep.subr.bf16.mxu0 0
    %669 = vmatpush2.bf16.msra.mxu0 0
    %670 = vmatprep.subr.bf16.mxu0 0
    %671 = vmatpush2.bf16.msra.mxu0 0
    %672 = vmatprep.subr.bf16.mxu0 0
    %673 = vmatpush2.bf16.msra.mxu0 0
    %674 = vmatprep.subr.bf16.mxu0 0
    %675 = vmatpush2.bf16.msra.mxu0 0
    %676 = vmatprep.subr.bf16.mxu0 0
    %677 = vmatpush2.bf16.msra.mxu0 0
    %678 = vmatprep.subr.bf16.mxu0 0
    %679 = vmatpush2.bf16.msra.mxu0 0
    %680 = vmatprep.subr.bf16.mxu0 0
    %681 = vmatpush2.bf16.msra.mxu0 0
    %682 = vmatprep.subr.bf16.mxu0 0
    %683 = vmatpush2.bf16.msra.mxu0 0
    %684 = vmatprep.mubr.bf16.mxu0 0
    %685 = vmatmul.mubr.bf16.gmra.mxu0 %v575
    %v686 = vpop.f32.mrf.mxu0
    %v687 = vadd.f32 %v603, %v686
    %v688 = vpop.f32.mrf.mxu0
    %v689 = vpop.f32.mrf.mxu0
    %v690 = vadd.f32 %v603, %v689
    %v691 = vpop.f32.mrf.mxu0
    %692 = vmatprep.mubr.bf16.mxu0 0
    %693 = vmatmul.mubr.bf16.gmra.mxu0 %v576
    %v694 = vpop.f32.mrf.mxu0
    %v695 = vadd.f32 %v603, %v694
    %v696 = vpop.f32.mrf.mxu0
    %v697 = vpop.f32.mrf.mxu0
    %v698 = vadd.f32 %v603, %v697
    %v699 = vpop.f32.mrf.mxu0
    %700 = vmatprep.mubr.bf16.mxu0 0
    %701 = vmatmul.mubr.bf16.gmra.mxu0 %v577
    %v702 = vpop.f32.mrf.mxu0
    %v703 = vadd.f32 %v603, %v702
    %v704 = vpop.f32.mrf.mxu0
    %v705 = vpop.f32.mrf.mxu0
    %v706 = vadd.f32 %v603, %v705
    %v707 = vpop.f32.mrf.mxu0
    %708 = vmatprep.mubr.bf16.mxu0 0
    %709 = vmatmul.mubr.bf16.gmra.mxu0 %v578
    %v710 = vpop.f32.mrf.mxu0
    %v711 = vadd.f32 %v603, %v710
    %v712 = vpop.f32.mrf.mxu0
    %v713 = vpop.f32.mrf.mxu0
    %v714 = vadd.f32 %v603, %v713
    %v715 = vpop.f32.mrf.mxu0
    %716 = vmatprep.mubr.bf16.mxu0 0
    %717 = vmatmul.mubr.bf16.gmra.mxu0 %v579
    %v718 = vpop.f32.mrf.mxu0
    %v719 = vadd.f32 %v603, %v718
    %v720 = vpop.f32.mrf.mxu0
    %v721 = vpop.f32.mrf.mxu0
    %v722 = vadd.f32 %v603, %v721
    %v723 = vpop.f32.mrf.mxu0
    %724 = vmatprep.mubr.bf16.mxu0 0
    %725 = vmatmul.mubr.bf16.gmra.mxu0 %v580
    %v726 = vpop.f32.mrf.mxu0
    %v727 = vadd.f32 %v603, %v726
    %v728 = vpop.f32.mrf.mxu0
    %v729 = vpop.f32.mrf.mxu0
    %v730 = vadd.f32 %v603, %v729
    %v731 = vpop.f32.mrf.mxu0
    %732 = vmatprep.mubr.bf16.mxu0 0
    %733 = vmatmul.mubr.bf16.gmra.mxu0 %v581
    %v734 = vpop.f32.mrf.mxu0
    %v735 = vadd.f32 %v603, %v734
    %v736 = vpop.f32.mrf.mxu0
    %v737 = vpop.f32.mrf.mxu0
    %v738 = vadd.f32 %v603, %v737
    %v739 = vpop.f32.mrf.mxu0
    %740 = vmatprep.mubr.bf16.mxu0 0
    %741 = vmatmul.mubr.bf16.gmra.mxu0 %v582
    %v742 = vpop.f32.mrf.mxu0
    %v743 = vadd.f32 %v603, %v742
    %v744 = vpop.f32.mrf.mxu0
    %v745 = vpop.f32.mrf.mxu0
    %v746 = vadd.f32 %v603, %v745
    %v747 = vpop.f32.mrf.mxu0
    %748 = vdwg.mxu0
    %v749 = vmax.f32 %v687, 0.0
    %v750 = vmax.f32 %v690, 0.0
    %v751 = vmax.f32 %v695, 0.0
    %v752 = vmax.f32 %v698, 0.0
    %v753 = vmax.f32 %v703, 0.0
    %v754 = vmax.f32 %v706, 0.0
    %v755 = vmax.f32 %v711, 0.0
    %v756 = vmax.f32 %v714, 0.0
    %v757 = vmax.f32 %v719, 0.0
    %v758 = vmax.f32 %v722, 0.0
    %v759 = vmax.f32 %v727, 0.0
    %v760 = vmax.f32 %v730, 0.0
    %v761 = vmax.f32 %v735, 0.0
    %v762 = vmax.f32 %v738, 0.0
    %v763 = vmax.f32 %v743, 0.0
    %v764 = vmax.f32 %v746, 0.0
    %v765 = vld [vmem:[%s5] sm:$0xf]
    %v766 = vpack.c.bf16 %v750, %v749
    %v767 = vpack.c.bf16 %v752, %v751
    %v768 = vpack.c.bf16 %v754, %v753
    %v769 = vpack.c.bf16 %v756, %v755
    %v770 = vpack.c.bf16 %v758, %v757
    %v771 = vpack.c.bf16 %v760, %v759
    %v772 = vpack.c.bf16 %v762, %v761
    %v773 = vpack.c.bf16 %v764, %v763
    %774 = vmatprep.subr.bf16.mxu0 0
    %775 = vmatpush1.bf16.xpose.msra.mxu0 %v773
    %776 = vmatprep.subr.bf16.mxu0 0
    %777 = vmatpush1.bf16.xpose.msra.mxu0 %v772
    %778 = vmatprep.subr.bf16.mxu0 0
    %779 = vmatpush1.bf16.xpose.msra.mxu0 %v771
    %780 = vmatprep.subr.bf16.mxu0 0
    %781 = vmatpush1.bf16.xpose.msra.mxu0 %v770
    %782 = vmatprep.subr.bf16.mxu0 0
    %783 = vmatpush1.bf16.xpose.msra.mxu0 %v769
    %784 = vmatprep.subr.bf16.mxu0 0
    %785 = vmatpush1.bf16.xpose.msra.mxu0 %v768
    %786 = vmatprep.subr.bf16.mxu0 0
    %787 = vmatpush1.bf16.xpose.msra.mxu0 %v767
    %788 = vmatprep.subr.bf16.mxu0 0
    %789 = vmatpush1.bf16.xpose.msra.mxu0 %v766
    %790 = vmatprep.subr.bf16.mxu0 0
    %791 = vmatpush2.bf16.xpose.msra.mxu0 0
    %792 = vmatprep.subr.bf16.mxu0 0
    %793 = vmatpush2.bf16.xpose.msra.mxu0 0
    %794 = vmatprep.subr.bf16.mxu0 0
    %795 = vmatpush2.bf16.xpose.msra.mxu0 0
    %796 = vmatprep.subr.bf16.mxu0 0
    %797 = vmatpush2.bf16.xpose.msra.mxu0 0
    %798 = vmatprep.subr.bf16.mxu0 0
    %799 = vmatpush2.bf16.xpose.msra.mxu0 0
    %800 = vmatprep.subr.bf16.mxu0 0
    %801 = vmatpush2.bf16.xpose.msra.mxu0 0
    %802 = vmatprep.subr.bf16.mxu0 0
    %803 = vmatpush2.bf16.xpose.msra.mxu0 0
    %804 = vmatprep.subr.bf16.mxu0 0
    %805 = vmatpush2.bf16.xpose.msra.mxu0 0
    %806 = vmatprep.mubr.bf16.mxu0 0
    %807 = vmatmul.mubr.bf16.gmra.mxu0 %v765
    %v808 = vpop.f32.mrf.mxu0
    %v809 = vadd.f32 0.0, %v808
    %v810 = vpop.f32.mrf.mxu0
    %v811 = vpop.f32.mrf.mxu0
    %v812 = vpop.f32.mrf.mxu0
    %813 = vdwg.mxu0
    %814 = vst [vmem:[#allocation2] sm:$0x1] %v809
    // Predicated region
    $region26: #{tpu_custom_call.1} parent=1 // pred_check
      _
    $region27: #{tpu_custom_call.1} parent=1 // pred_check_branch
      %816 = sbr.rel (0) target = $region29
    $region28: #{tpu_custom_call.1} parent=1 // pred_region
      %s818 = ssub.s32 16, 16
      %819 = vsyncadd [#allocation3], %s818
      %s821 = sshll.u32 [#allocation2], 4
      %s822 = int_to_ptr.vmem [resolvable:$true] %s821
      %824 = dma.vmem_to_hbm [thread:$0]  %s822, 16, %s6, [#allocation3]
    $region29: #{tpu_custom_call.1} parent=1 // pred_fallthru
      _
    // Predicated region
    $region30: #{tpu_custom_call.1} parent=1 // pred_check
      _
    $region31: #{tpu_custom_call.1} parent=1 // pred_check_branch
      %826 = sbr.rel (0) target = $region33
    $region32: #{tpu_custom_call.1} parent=1 // pred_region
      %827 = dma.done [#allocation3], 16
    $region33: #{tpu_custom_call.1} parent=1 // pred_fallthru
      _
    %828 = vsyncpa [#allocation3], 1

</llo_original>
